<compile_context>
chip_gen: v6e
topology: v6e:2x2x1
jax: 0.10.0
libtpu: 0.0.40
codegen_flags: <defaults>
</compile_context>

<pallas_src>
import functools

import jax
import jax.numpy as jnp
from jax.experimental import pallas as pl
from jax.experimental.pallas import tpu as pltpu

LANE = 128
SUBLANE = 8


def _round_up(n, m):
    return ((n + m - 1) // m) * m


def _pad2(a, rows, cols):
    return jnp.pad(a, ((0, rows - a.shape[0]), (0, cols - a.shape[1])))


def _vmem_cap_bytes():
    """Physical VMEM per core (falls back to the v7x 64 MiB worst case)."""
    try:
        info = pltpu.get_tpu_info()
        cap = getattr(info, "vmem_capacity_bytes", None)
        if cap:
            return int(cap)
    except Exception:
        pass
    return 64 * 1024 * 1024


def grn_kernel(x_ref, w1_ref, b1_ref, w2_ref, b2_ref, out_ref,
               *, h_p, dout_p, d_out, mxu_dtype):
    """One batch tile of the GRN forward.

    x_ref  : (TILE_B, d_in)            f32 (cast to bf16 in-kernel)
    w1_ref : (d_in, 2*h_p + dout_p)    bf16  = [glu1.fc1 | glu1.fc2 | skip]
    b1_ref : (1, 2*h_p + dout_p)       f32
    w2_ref : (h_p, 2*dout_p)           bf16  = [glu2.fc1 | glu2.fc2]
    b2_ref : (1, 2*dout_p)             f32
    out_ref: (TILE_B, d_out)           f32 (narrow, unpadded store)
    """
    x = x_ref[...].astype(mxu_dtype)  # in-kernel cast; no host-side pad/cast

    # Fused matmul #1: one MXU pass yields glu1.fc1(x), glu1.fc2(x), skip(x).
    y1 = jnp.dot(x, w1_ref[...], preferred_element_type=jnp.float32) + b1_ref[...]
    h1 = y1[:, :h_p]
    h2 = y1[:, h_p:2 * h_p]
    skip = y1[:, 2 * h_p:]
    h = h1 * jax.nn.sigmoid(h2)                       # GLU1 (f32 VPU/EUP)

    # Fused matmul #2: one MXU pass yields glu2.fc1(h), glu2.fc2(h).
    y2 = jnp.dot(h.astype(mxu_dtype), w2_ref[...],
                 preferred_element_type=jnp.float32) + b2_ref[...]
    o1 = y2[:, :dout_p]
    o2 = y2[:, dout_p:]
    out = o1 * jax.nn.sigmoid(o2)                     # GLU2

    # ReLU(out + skip); store only the real d_out columns (narrow writeback).
    out_ref[...] = jnp.maximum(out + skip, 0.0)[:, :d_out].astype(out_ref.dtype)


def pack_params(params, *, mxu_dtype=jnp.bfloat16):
    """One-time packing: concat + lane-pad + bf16-cast the five Linears.

    Hoisted out of the per-call path so the forward does no weight repacking.
    """
    d_in, hidden = params["g1_w1"].shape
    d_out = params["sk_w"].shape[1]
    h_p = _round_up(hidden, LANE)
    dout_p = _round_up(d_out, LANE)

    w1_cat = jnp.concatenate(
        [_pad2(params["g1_w1"], d_in, h_p),       # NOTE: K stays d_in (no K pad)
         _pad2(params["g1_w2"], d_in, h_p),
         _pad2(params["sk_w"], d_in, dout_p)], axis=1).astype(mxu_dtype)
    b1_cat = jnp.concatenate(
        [_pad2(params["g1_b1"], 1, h_p),
         _pad2(params["g1_b2"], 1, h_p),
         _pad2(params["sk_b"], 1, dout_p)], axis=1).astype(jnp.float32)
    w2_cat = jnp.concatenate(
        [_pad2(params["g2_w1"], h_p, dout_p),
         _pad2(params["g2_w2"], h_p, dout_p)], axis=1).astype(mxu_dtype)
    b2_cat = jnp.concatenate(
        [_pad2(params["g2_b1"], 1, dout_p),
         _pad2(params["g2_b2"], 1, dout_p)], axis=1).astype(jnp.float32)

    return dict(
        w1=w1_cat, b1=b1_cat, w2=w2_cat, b2=b2_cat,
        d_in=d_in, hidden=hidden, d_out=d_out, h_p=h_p, dout_p=dout_p,
        mxu_dtype=mxu_dtype,
    )


def gated_residual_network(x, packed, *, tile_b=1024):
    """Forward pass. `packed` comes from pack_params() (weights already packed)."""
    B, d_in = x.shape
    assert d_in == packed["d_in"]
    h_p, dout_p, d_out = packed["h_p"], packed["dout_p"], packed["d_out"]
    mxu_dtype = packed["mxu_dtype"]
    n1 = 2 * h_p + dout_p
    n2 = 2 * dout_p

    # Batch tile: multiple of 16 (bf16 sublane packing) when the batch allows,
    # clamped to the batch; shrink so the grid has >= 2 steps for megacore.
    align = 16 if B >= 16 else SUBLANE
    tile_b = max(align, _round_up(min(tile_b, B), align))
    if pl.cdiv(B, tile_b) < 2 and B > 2 * align:
        tile_b = _round_up(pl.cdiv(B, 2), align)
    grid = (pl.cdiv(B, tile_b),)

    # VMEM budget: resident packed weights + double-buffered x/out tiles + f32
    # intermediates, 2x headroom, capped at 75% of physical VMEM per core.
    est = (d_in * n1 + h_p * n2) * 2 + (n1 + n2) * 4          # weights/biases
    est += 2 * tile_b * d_in * 4 + 2 * tile_b * d_out * 4      # x / out buffers
    est += 2 * tile_b * (n1 + h_p + n2 + dout_p) * 4           # intermediates
    vmem_limit = min(max(2 * est, 32 * 1024 * 1024),
                     int(_vmem_cap_bytes() * 0.75))

    kernel = functools.partial(grn_kernel, h_p=h_p, dout_p=dout_p,
                               d_out=d_out, mxu_dtype=mxu_dtype)

    return pl.pallas_call(
        kernel,
        out_shape=jax.ShapeDtypeStruct((B, d_out), jnp.float32),
        grid=grid,
        in_specs=[
            # x: unpadded f32, one batch tile per grid step (auto double-buffered).
            # Last block dim == full d_in, so the (8,128) rule is satisfied.
            pl.BlockSpec((tile_b, d_in), lambda i: (i, 0)),
            # Weights/biases: constant block index -> loaded once, stay resident.
            pl.BlockSpec((d_in, n1), lambda i: (0, 0)),
            pl.BlockSpec((1, n1), lambda i: (0, 0)),
            pl.BlockSpec((h_p, n2), lambda i: (0, 0)),
            pl.BlockSpec((1, n2), lambda i: (0, 0)),
        ],
        # Narrow, unpadded output (last dim == full d_out): minimal writeback,
        # no post-kernel slice needed.
        out_specs=pl.BlockSpec((tile_b, d_out), lambda i: (i, 0)),
        compiler_params=pltpu.CompilerParams(
            dimension_semantics=("parallel",),
            vmem_limit_bytes=vmem_limit,
        ),
    )(x, packed["w1"], packed["b1"], packed["w2"], packed["b2"])


def init_params(key, input_dim, output_dim, hidden_dim):
    """Deterministic PyTorch-Linear-style init: U(-1/sqrt(fan_in), 1/sqrt(fan_in))."""
    def linear(k, fan_in, fan_out):
        kw, kb = jax.random.split(k)
        bound = 1.0 / jnp.sqrt(fan_in)
        w = jax.random.uniform(kw, (fan_in, fan_out), jnp.float32, -bound, bound)
        b = jax.random.uniform(kb, (1, fan_out), jnp.float32, -bound, bound)
        return w, b

    keys = jax.random.split(key, 5)
    g1_w1, g1_b1 = linear(keys[0], input_dim, hidden_dim)
    g1_w2, g1_b2 = linear(keys[1], input_dim, hidden_dim)
    g2_w1, g2_b1 = linear(keys[2], hidden_dim, output_dim)
    g2_w2, g2_b2 = linear(keys[3], hidden_dim, output_dim)
    sk_w, sk_b = linear(keys[4], input_dim, output_dim)
    return dict(
        g1_w1=g1_w1, g1_b1=g1_b1, g1_w2=g1_w2, g1_b2=g1_b2,
        g2_w1=g2_w1, g2_b1=g2_b1, g2_w2=g2_w2, g2_b2=g2_b2,
        sk_w=sk_w, sk_b=sk_b,
    )


def reference_forward(x, p):
    """Pure-JAX f32 reference mirroring the PyTorch module."""
    h = (x @ p["g1_w1"] + p["g1_b1"]) * jax.nn.sigmoid(x @ p["g1_w2"] + p["g1_b2"])
    out = (h @ p["g2_w1"] + p["g2_b1"]) * jax.nn.sigmoid(h @ p["g2_w2"] + p["g2_b2"])
    skip = x @ p["sk_w"] + p["sk_b"]
    return jnp.maximum(out + skip, 0.0)


if __name__ == "__main__":
    key = jax.random.PRNGKey(0)
    kx, kp, kx2 = jax.random.split(key, 3)

    input_dim, hidden_dim, output_dim = 32, 64, 16
    params = init_params(kp, input_dim, output_dim, hidden_dim)
    packed = pack_params(params)            # one-time weight packing (hoisted)

    # Small batch: single grid step, exercises feature/N padding inside kernel.
    x_small = jax.random.normal(kx, (8, input_dim), dtype=jnp.float32)
    y_small = jax.block_until_ready(gated_residual_network(x_small, packed))
    ref_small = reference_forward(x_small, params)
    assert y_small.shape == ref_small.shape
    # bf16 MXU operands (f32 accumulate) -> relaxed tolerance vs f32 reference.
    assert jnp.allclose(y_small, ref_small, atol=3e-2, rtol=3e-2), \
        float(jnp.max(jnp.abs(y_small - ref_small)))

    # Ragged larger batch: exercises multi-step grid (>=2 steps for megacore),
    # ragged last block, resident weights, narrow output store.
    x_big = jax.random.normal(kx2, (200, input_dim), dtype=jnp.float32)
    y_big = jax.block_until_ready(gated_residual_network(x_big, packed))
    ref_big = reference_forward(x_big, params)
    assert y_big.shape == ref_big.shape
    assert jnp.allclose(y_big, ref_big, atol=3e-2, rtol=3e-2), \
        float(jnp.max(jnp.abs(y_big - ref_big)))

    print("KERNEL_OK")
</pallas_src>

<mosaic_0001>
module attributes {stable_mosaic.version = 11 : i64} {
  func.func @grn_kernel(%arg0: i32, %arg1: memref<8x32xf32, #tpu.memory_space<vmem>>, %arg2: memref<32x384xbf16, #tpu.memory_space<vmem>>, %arg3: memref<1x384xf32, #tpu.memory_space<vmem>>, %arg4: memref<128x256xbf16, #tpu.memory_space<vmem>>, %arg5: memref<1x256xf32, #tpu.memory_space<vmem>>, %arg6: memref<8x16xf32, #tpu.memory_space<vmem>>) attributes {dimension_semantics = [#tpu.dimension_semantics<parallel>], iteration_bounds = array<i64: 1>, scalar_prefetch = 0 : i64, scratch_operands = 0 : i64, tpu.core_type = #tpu.core_type<tc>, window_params = [{transform_indices = @transform_0, window_bounds = array<i64: 8, 32>}, {pipeline_mode = #tpu.pipeline_mode<synchronous>, transform_indices = @transform_1, window_bounds = array<i64: 32, 384>}, {pipeline_mode = #tpu.pipeline_mode<synchronous>, transform_indices = @transform_2, window_bounds = array<i64: 1, 384>}, {pipeline_mode = #tpu.pipeline_mode<synchronous>, transform_indices = @transform_3, window_bounds = array<i64: 128, 256>}, {pipeline_mode = #tpu.pipeline_mode<synchronous>, transform_indices = @transform_4, window_bounds = array<i64: 1, 256>}, {transform_indices = @transform_5, window_bounds = array<i64: 8, 16>}]} {
    %c0 = arith.constant 0 : index
    %c0_0 = arith.constant 0 : index
    %0 = vector.load %arg1[%c0, %c0_0] : memref<8x32xf32, #tpu.memory_space<vmem>>, vector<8x32xf32>
    %1 = arith.truncf %0 : vector<8x32xf32> to vector<8x32xbf16>
    %c0_1 = arith.constant 0 : index
    %c0_2 = arith.constant 0 : index
    %2 = vector.load %arg2[%c0_1, %c0_2] : memref<32x384xbf16, #tpu.memory_space<vmem>>, vector<32x384xbf16>
    %cst = arith.constant dense<0.000000e+00> : vector<8x384xf32>
    %3 = tpu.matmul %1, %2, %cst {dimension_numbers = #tpu.dot_dimension_numbers<[1], [0], [0], [1], [0, 0, 1, 1], [], []>} : vector<8x32xbf16>, vector<32x384xbf16>, vector<8x384xf32> -> vector<8x384xf32>
    %c0_3 = arith.constant 0 : index
    %c0_4 = arith.constant 0 : index
    %4 = vector.load %arg3[%c0_3, %c0_4] : memref<1x384xf32, #tpu.memory_space<vmem>>, vector<1x384xf32>
    %5 = vector.broadcast %4 : vector<1x384xf32> to vector<8x384xf32>
    %6 = arith.addf %3, %5 : vector<8x384xf32>
    %7 = vector.extract_strided_slice %6 {offsets = [0, 0], sizes = [8, 128], strides = [1, 1]} : vector<8x384xf32> to vector<8x128xf32>
    %8 = vector.extract_strided_slice %6 {offsets = [0, 128], sizes = [8, 128], strides = [1, 1]} : vector<8x384xf32> to vector<8x128xf32>
    %9 = vector.extract_strided_slice %6 {offsets = [0, 256], sizes = [8, 128], strides = [1, 1]} : vector<8x384xf32> to vector<8x128xf32>
    %10 = arith.negf %8 : vector<8x128xf32>
    %11 = math.exp %10 : vector<8x128xf32>
    %cst_5 = arith.constant 1.000000e+00 : f32
    %12 = vector.broadcast %cst_5 : f32 to vector<8x128xf32>
    %13 = arith.addf %12, %11 : vector<8x128xf32>
    %14 = arith.divf %12, %13 : vector<8x128xf32>
    %15 = arith.mulf %7, %14 : vector<8x128xf32>
    %16 = arith.truncf %15 : vector<8x128xf32> to vector<8x128xbf16>
    %c0_6 = arith.constant 0 : index
    %c0_7 = arith.constant 0 : index
    %17 = vector.load %arg4[%c0_6, %c0_7] : memref<128x256xbf16, #tpu.memory_space<vmem>>, vector<128x256xbf16>
    %cst_8 = arith.constant dense<0.000000e+00> : vector<8x256xf32>
    %18 = tpu.matmul %16, %17, %cst_8 {dimension_numbers = #tpu.dot_dimension_numbers<[1], [0], [0], [1], [0, 0, 1, 1], [], []>} : vector<8x128xbf16>, vector<128x256xbf16>, vector<8x256xf32> -> vector<8x256xf32>
    %c0_9 = arith.constant 0 : index
    %c0_10 = arith.constant 0 : index
    %19 = vector.load %arg5[%c0_9, %c0_10] : memref<1x256xf32, #tpu.memory_space<vmem>>, vector<1x256xf32>
    %20 = vector.broadcast %19 : vector<1x256xf32> to vector<8x256xf32>
    %21 = arith.addf %18, %20 : vector<8x256xf32>
    %22 = vector.extract_strided_slice %21 {offsets = [0, 0], sizes = [8, 128], strides = [1, 1]} : vector<8x256xf32> to vector<8x128xf32>
    %23 = vector.extract_strided_slice %21 {offsets = [0, 128], sizes = [8, 128], strides = [1, 1]} : vector<8x256xf32> to vector<8x128xf32>
    %24 = arith.negf %23 : vector<8x128xf32>
    %25 = math.exp %24 : vector<8x128xf32>
    %cst_11 = arith.constant 1.000000e+00 : f32
    %26 = vector.broadcast %cst_11 : f32 to vector<8x128xf32>
    %27 = arith.addf %26, %25 : vector<8x128xf32>
    %28 = arith.divf %26, %27 : vector<8x128xf32>
    %29 = arith.mulf %22, %28 : vector<8x128xf32>
    %30 = arith.addf %29, %9 : vector<8x128xf32>
    %cst_12 = arith.constant 0.000000e+00 : f32
    %31 = vector.broadcast %cst_12 : f32 to vector<8x128xf32>
    %32 = arith.maximumf %30, %31 : vector<8x128xf32>
    %33 = vector.extract_strided_slice %32 {offsets = [0, 0], sizes = [8, 16], strides = [1, 1]} : vector<8x128xf32> to vector<8x16xf32>
    %c0_13 = arith.constant 0 : index
    %c0_14 = arith.constant 0 : index
    %34 = vector.load %arg6[%c0_13, %c0_14] : memref<8x16xf32, #tpu.memory_space<vmem>>, vector<8x16xf32>
    tpu.vector_store %arg6[%c0_13, %c0_14], %33 {strides = array<i32>} : memref<8x16xf32, #tpu.memory_space<vmem>>, vector<8x16xf32>,
    return
  }
  func.func @transform_0(%arg0: i32) -> (i32, i32) {
    %c0_i32 = arith.constant 0 : i32
    %c0_i32_0 = arith.constant 0 : i32
    return %arg0, %c0_i32 : i32, i32
  }
  func.func @transform_1(%arg0: i32) -> (i32, i32) {
    %c0_i32 = arith.constant 0 : i32
    %c0_i32_0 = arith.constant 0 : i32
    %c0_i32_1 = arith.constant 0 : i32
    return %c0_i32, %c0_i32_0 : i32, i32
  }
  func.func @transform_2(%arg0: i32) -> (i32, i32) {
    %c0_i32 = arith.constant 0 : i32
    %c0_i32_0 = arith.constant 0 : i32
    %c0_i32_1 = arith.constant 0 : i32
    return %c0_i32, %c0_i32_0 : i32, i32
  }
  func.func @transform_3(%arg0: i32) -> (i32, i32) {
    %c0_i32 = arith.constant 0 : i32
    %c0_i32_0 = arith.constant 0 : i32
    %c0_i32_1 = arith.constant 0 : i32
    return %c0_i32, %c0_i32_0 : i32, i32
  }
  func.func @transform_4(%arg0: i32) -> (i32, i32) {
    %c0_i32 = arith.constant 0 : i32
    %c0_i32_0 = arith.constant 0 : i32
    %c0_i32_1 = arith.constant 0 : i32
    return %c0_i32, %c0_i32_0 : i32, i32
  }
  func.func @transform_5(%arg0: i32) -> (i32, i32) {
    %c0_i32 = arith.constant 0 : i32
    %c0_i32_0 = arith.constant 0 : i32
    return %arg0, %c0_i32 : i32, i32
  }
}

</mosaic_0001>

<llo_original>
// kernel: tpu_custom_call.1
$region0: #{tpu_custom_call.1}
  #allocation0 [shape = 'u32[]', space=smem, size = 0x4, offset = 0x4, fixed_abs, tag = 'smem constant byte address 0x4 - core index']
  #allocation1 [shape = 'u32[144,128]{1,0:T(1,128)}', space=vmem, size = 0x12000, scoped, tag = 'internal scratch']
  %s0 = inlined_call_operand.hbm [shape: f32[8,32], index: 0, kind: input, shape index: {}]
  %s1 = inlined_call_operand.hbm [shape: bf16[32,384], index: 1, kind: input, shape index: {}]
  %s2 = inlined_call_operand.vmem [shape: f32[1,384], index: 2, kind: input, shape index: {}]
  %s3 = inlined_call_operand.hbm [shape: bf16[128,256], index: 3, kind: input, shape index: {}]
  %s4 = inlined_call_operand.vmem [shape: f32[1,256], index: 4, kind: input, shape index: {}]
  %s5 = inlined_call_operand.hbm [shape: f32[8,16], index: 5, kind: output, shape index: {}]
  %s6 = sld [smem:[#allocation0]]
  $region42: #{tpu_custom_call.1} parent=0
    _
  %s8 = ssub.s32 1, %s6
  %s9 = scalar_select 0, %s8, %s6
  $region1: #{tpu_custom_call.1} parent=0
    #allocation2 [shape = 'u8[4096]{0}', space=vmem, size = 0x1000, scoped, tag = 'input window, operand 0, single buffered']
    #allocation3 [shape = 's32[1]{0}', space=sflag, size = 0x4, scoped, tag = 'scoped memory for tpu_custom_call.1']
    #allocation4 [shape = 's32[1]{0}', space=sflag, size = 0x4, scoped, tag = 'scoped memory for tpu_custom_call.1']
    #allocation5 [shape = 'u8[24576]{0}', space=vmem, size = 0x6000, scoped, tag = 'input window, operand 1, single buffered']
    #allocation6 [shape = 's32[1]{0}', space=sflag, size = 0x4, scoped, tag = 'scoped memory for tpu_custom_call.1']
    #allocation7 [shape = 'u8[65536]{0}', space=vmem, size = 0x10000, scoped, tag = 'input window, operand 3, single buffered']
    #allocation8 [shape = 'u8[4096]{0}', space=vmem, size = 0x1000, scoped, tag = 'output window, operand 0, single buffered']
    %10 = vsyncpa [#allocation3], 0
    %11 = vsyncpa [#allocation6], 0
    %12 = vsyncpa [#allocation4], 0
    // Predicated region
    $region2: #{tpu_custom_call.1} parent=1 // pred_check
      _
    $region3: #{tpu_custom_call.1} parent=1 // pred_check_branch
      %14 = sbr.rel (0) target = $region5
    $region4: #{tpu_custom_call.1} parent=1 // pred_region
      %s16 = ssub.s32 128, 128
      %17 = vsyncadd [#allocation3], %s16
      %s19 = sshll.u32 [#allocation2], 4
      %s20 = int_to_ptr.vmem [resolvable:$true] %s19
      %22 = dma.hbm_to_vmem [thread:$0]  %s0, 128, %s20, [#allocation3]
    $region5: #{tpu_custom_call.1} parent=1 // pred_fallthru
      _
    // Predicated region
    $region6: #{tpu_custom_call.1} parent=1 // pred_check
      _
    $region7: #{tpu_custom_call.1} parent=1 // pred_check_branch
      %24 = sbr.rel (0) target = $region9
    $region8: #{tpu_custom_call.1} parent=1 // pred_region
      %s26 = ssub.s32 768, 768
      %27 = vsyncadd [#allocation6], %s26
      %s28 = sshll.u32 [#allocation5], 4
      %s29 = int_to_ptr.vmem [resolvable:$true] %s28
      %34 = dma.hbm_to_vmem [thread:$0]  %s1, 768, %s29, [#allocation6], 192, 192, 12
    $region9: #{tpu_custom_call.1} parent=1 // pred_fallthru
      _
    // Predicated region
    $region10: #{tpu_custom_call.1} parent=1 // pred_check
      _
    $region11: #{tpu_custom_call.1} parent=1 // pred_check_branch
      %36 = sbr.rel (0) target = $region13
    $region12: #{tpu_custom_call.1} parent=1 // pred_region
      _
    $region13: #{tpu_custom_call.1} parent=1 // pred_fallthru
      _
    // Predicated region
    $region14: #{tpu_custom_call.1} parent=1 // pred_check
      _
    $region15: #{tpu_custom_call.1} parent=1 // pred_check_branch
      %38 = sbr.rel (0) target = $region17
    $region16: #{tpu_custom_call.1} parent=1 // pred_region
      %s40 = ssub.s32 2048, 2048
      %41 = vsyncadd [#allocation6], %s40
      %s42 = sshll.u32 [#allocation7], 4
      %s43 = int_to_ptr.vmem [resolvable:$true] %s42
      %48 = dma.hbm_to_vmem [thread:$0]  %s3, 2048, %s43, [#allocation6], 128, 128, 8
    $region17: #{tpu_custom_call.1} parent=1 // pred_fallthru
      _
    // Predicated region
    $region18: #{tpu_custom_call.1} parent=1 // pred_check
      _
    $region19: #{tpu_custom_call.1} parent=1 // pred_check_branch
      %50 = sbr.rel (0) target = $region21
    $region20: #{tpu_custom_call.1} parent=1 // pred_region
      _
    $region21: #{tpu_custom_call.1} parent=1 // pred_fallthru
      _
    // Predicated region
    $region22: #{tpu_custom_call.1} parent=1 // pred_check
      _
    $region23: #{tpu_custom_call.1} parent=1 // pred_check_branch
      %52 = sbr.rel (0) target = $region25
    $region24: #{tpu_custom_call.1} parent=1 // pred_region
      %53 = dma.done [#allocation3], 128
    $region25: #{tpu_custom_call.1} parent=1 // pred_fallthru
      _
    // Predicated region
    $region26: #{tpu_custom_call.1} parent=1 // pred_check
      _
    $region27: #{tpu_custom_call.1} parent=1 // pred_check_branch
      %55 = sbr.rel (0) target = $region29
    $region28: #{tpu_custom_call.1} parent=1 // pred_region
      %56 = dma.done [#allocation6], 768
    $region29: #{tpu_custom_call.1} parent=1 // pred_fallthru
      _
    // Predicated region
    $region30: #{tpu_custom_call.1} parent=1 // pred_check
      _
    $region31: #{tpu_custom_call.1} parent=1 // pred_check_branch
      %58 = sbr.rel (0) target = $region33
    $region32: #{tpu_custom_call.1} parent=1 // pred_region
      %59 = dma.done [#allocation6], 2048
    $region33: #{tpu_custom_call.1} parent=1 // pred_fallthru
      _
    %v61 = vld [vmem:[#allocation2] sm:$0xff]
    %v62 = vpack.c.bf16 %v61, %v61
    %v63 = vld [vmem:[#allocation5] sm:$0xff]
    %v64 = vld [vmem:[#allocation5 + $0x8] sm:$0xf]
    %v65 = vld [vmem:[#allocation5 + $0xc] sm:$0xff]
    %v66 = vld [vmem:[#allocation5 + $0x14] sm:$0xf]
    %v67 = vld [vmem:[#allocation5 + $0x18] sm:$0xff]
    %v68 = vld [vmem:[#allocation5 + $0x20] sm:$0xf]
    %v69 = vld [vmem:[#allocation5 + $0x24] sm:$0xff]
    %v70 = vld [vmem:[#allocation5 + $0x2c] sm:$0xf]
    %v71 = vld [vmem:[%s2] sm:$0x7]
    %v73 = vlaneseq
    %v74 = vshrl.u32 %v73, 7
    %v75 = vsub.s32 0, %v74
    %v76 = vrot.slane %v71, %v75
    %v77 = vlaneseq
    %v78 = vshrl.u32 %v77, 7
    %v79 = vsub.s32 1, %v78
    %v80 = vrot.slane %v71, %v79
    %v81 = vlaneseq
    %v82 = vshrl.u32 %v81, 7
    %v83 = vsub.s32 2, %v82
    %v84 = vrot.slane %v71, %v83
    %v96 = vunpack.c.l.b16 %v63
    %v97 = vunpack.c.h.b16 %v63
    %v98 = vunpack.c.l.b16 %v64
    %v99 = vunpack.c.l.b16 %v65
    %v100 = vunpack.c.h.b16 %v65
    %v101 = vunpack.c.l.b16 %v66
    %v102 = vunpack.c.l.b16 %v67
    %v103 = vunpack.c.h.b16 %v67
    %v104 = vunpack.c.l.b16 %v68
    %v105 = vunpack.c.l.b16 %v69
    %v106 = vunpack.c.h.b16 %v69
    %v107 = vunpack.c.l.b16 %v70
    %v108 = vpack.c.b16 %v99, %v96
    %v109 = vpack.c.b16 %v100, %v97
    %v110 = vpack.c.b16 %v101, %v98
    %v111 = vpack.c.b16 %v105, %v102
    %v112 = vpack.c.b16 %v106, %v103
    %v113 = vpack.c.b16 %v107, %v104
    %vm120 = vcmask 261120
    %v122 = vsel %vm120, %v62, 0
    %124 = vmatprep.subr.bf16.mxu0 0
    %125 = vmatpush1.bf16.msra.mxu0 0
    %126 = vmatprep.subr.bf16.mxu0 0
    %127 = vmatpush1.bf16.msra.mxu0 0
    %128 = vmatprep.subr.bf16.mxu0 0
    %129 = vmatpush1.bf16.msra.mxu0 0
    %130 = vmatprep.subr.bf16.mxu0 0
    %131 = vmatpush1.bf16.msra.mxu0 0
    %132 = vmatprep.subr.bf16.mxu0 0
    %133 = vmatpush1.bf16.msra.mxu0 0
    %134 = vmatprep.subr.bf16.mxu0 0
    %135 = vmatpush1.bf16.msra.mxu0 0
    %136 = vmatprep.subr.bf16.mxu0 %v112
    %137 = vmatpush1.bf16.msra.mxu0 %v111
    %138 = vmatprep.subr.bf16.mxu0 %v109
    %139 = vmatpush1.bf16.msra.mxu0 %v108
    %140 = vmatprep.subr.bf16.mxu0 0
    %141 = vmatpush2.bf16.msra.mxu0 0
    %142 = vmatprep.subr.bf16.mxu0 0
    %143 = vmatpush2.bf16.msra.mxu0 0
    %144 = vmatprep.subr.bf16.mxu0 0
    %145 = vmatpush2.bf16.msra.mxu0 0
    %146 = vmatprep.subr.bf16.mxu0 0
    %147 = vmatpush2.bf16.msra.mxu0 0
    %148 = vmatprep.subr.bf16.mxu0 0
    %149 = vmatpush2.bf16.msra.mxu0 0
    %150 = vmatprep.subr.bf16.mxu0 0
    %151 = vmatpush2.bf16.msra.mxu0 0
    %152 = vmatprep.subr.bf16.mxu0 0
    %153 = vmatpush2.bf16.msra.mxu0 0
    %154 = vmatprep.subr.bf16.mxu0 0
    %155 = vmatpush2.bf16.msra.mxu0 0
    %156 = vmatprep.mubr.bf16.mxu0 0
    %157 = vmatmul.mubr.bf16.gmra.mxu0 %v122
    %v158 = vpop.f32.mrf.mxu0
    %v159 = vadd.f32 %v76, %v158
    %v160 = vpop.f32.mrf.mxu0
    %v161 = vadd.f32 %v80, %v160
    %v162 = vpop.f32.mrf.mxu0
    %v163 = vpop.f32.mrf.mxu0
    %164 = vdwg.mxu0
    %165 = vmatprep.subr.bf16.mxu0 0
    %166 = vmatpush1.bf16.msra.mxu0 0
    %167 = vmatprep.subr.bf16.mxu0 0
    %168 = vmatpush1.bf16.msra.mxu0 0
    %169 = vmatprep.subr.bf16.mxu0 0
    %170 = vmatpush1.bf16.msra.mxu0 0
    %171 = vmatprep.subr.bf16.mxu0 0
    %172 = vmatpush1.bf16.msra.mxu0 0
    %173 = vmatprep.subr.bf16.mxu0 0
    %174 = vmatpush1.bf16.msra.mxu0 0
    %175 = vmatprep.subr.bf16.mxu0 0
    %176 = vmatpush1.bf16.msra.mxu0 0
    %177 = vmatprep.subr.bf16.mxu0 0
    %178 = vmatpush1.bf16.msra.mxu0 %v113
    %179 = vmatprep.subr.bf16.mxu0 0
    %180 = vmatpush1.bf16.msra.mxu0 %v110
    %181 = vmatprep.subr.bf16.mxu0 0
    %182 = vmatpush2.bf16.msra.mxu0 0
    %183 = vmatprep.subr.bf16.mxu0 0
    %184 = vmatpush2.bf16.msra.mxu0 0
    %185 = vmatprep.subr.bf16.mxu0 0
    %186 = vmatpush2.bf16.msra.mxu0 0
    %187 = vmatprep.subr.bf16.mxu0 0
    %188 = vmatpush2.bf16.msra.mxu0 0
    %189 = vmatprep.subr.bf16.mxu0 0
    %190 = vmatpush2.bf16.msra.mxu0 0
    %191 = vmatprep.subr.bf16.mxu0 0
    %192 = vmatpush2.bf16.msra.mxu0 0
    %193 = vmatprep.subr.bf16.mxu0 0
    %194 = vmatpush2.bf16.msra.mxu0 0
    %195 = vmatprep.subr.bf16.mxu0 0
    %196 = vmatpush2.bf16.msra.mxu0 0
    %197 = vmatprep.mubr.bf16.mxu0 0
    %198 = vmatmul.mubr.bf16.gmra.mxu0 %v122
    %v199 = vpop.f32.mrf.mxu0
    %v200 = vadd.f32 %v84, %v199
    %v201 = vpop.f32.mrf.mxu0
    %v202 = vpop.f32.mrf.mxu0
    %v203 = vpop.f32.mrf.mxu0
    %204 = vdwg.mxu0
    %v205 = vxor.u32 %v161, 2147483648
    %v206 = vmul.f32 %v205, 1.442695
    %v207 = vpow.pop %v206
    %v208 = vadd.f32 %v207, 1.0
    %v209 = vrcp.pop %v208
    %v210 = vmul.f32 1.0, %v209
    %v211 = vmul.f32 %v159, %v210
    %v212 = vpack.c.bf16 %v211, %v211
    %v213 = vld [vmem:[#allocation7] sm:$0xff]
    %v214 = vld [vmem:[#allocation7 + $0x8] sm:$0xff]
    %v215 = vld [vmem:[#allocation7 + $0x10] sm:$0xff]
    %v216 = vld [vmem:[#allocation7 + $0x18] sm:$0xff]
    %v217 = vld [vmem:[#allocation7 + $0x20] sm:$0xff]
    %v218 = vld [vmem:[#allocation7 + $0x28] sm:$0xff]
    %v219 = vld [vmem:[#allocation7 + $0x30] sm:$0xff]
    %v220 = vld [vmem:[#allocation7 + $0x38] sm:$0xff]
    %v221 = vld [vmem:[#allocation7 + $0x40] sm:$0xff]
    %v222 = vld [vmem:[#allocation7 + $0x48] sm:$0xff]
    %v223 = vld [vmem:[#allocation7 + $0x50] sm:$0xff]
    %v224 = vld [vmem:[#allocation7 + $0x58] sm:$0xff]
    %v225 = vld [vmem:[#allocation7 + $0x60] sm:$0xff]
    %v226 = vld [vmem:[#allocation7 + $0x68] sm:$0xff]
    %v227 = vld [vmem:[#allocation7 + $0x70] sm:$0xff]
    %v228 = vld [vmem:[#allocation7 + $0x78] sm:$0xff]
    %v229 = vld [vmem:[%s4] sm:$0x3]
    %v231 = vlaneseq
    %v232 = vshrl.u32 %v231, 7
    %v233 = vsub.s32 0, %v232
    %v234 = vrot.slane %v229, %v233
    %v235 = vlaneseq
    %v236 = vshrl.u32 %v235, 7
    %v237 = vsub.s32 1, %v236
    %v238 = vrot.slane %v229, %v237
    %v257 = vunpack.c.l.b16 %v213
    %v258 = vunpack.c.h.b16 %v213
    %v259 = vunpack.c.l.b16 %v214
    %v260 = vunpack.c.h.b16 %v214
    %v261 = vunpack.c.l.b16 %v215
    %v262 = vunpack.c.h.b16 %v215
    %v263 = vunpack.c.l.b16 %v216
    %v264 = vunpack.c.h.b16 %v216
    %v265 = vunpack.c.l.b16 %v217
    %v266 = vunpack.c.h.b16 %v217
    %v267 = vunpack.c.l.b16 %v218
    %v268 = vunpack.c.h.b16 %v218
    %v269 = vunpack.c.l.b16 %v219
    %v270 = vunpack.c.h.b16 %v219
    %v271 = vunpack.c.l.b16 %v220
    %v272 = vunpack.c.h.b16 %v220
    %v273 = vunpack.c.l.b16 %v221
    %v274 = vunpack.c.h.b16 %v221
    %v275 = vunpack.c.l.b16 %v222
    %v276 = vunpack.c.h.b16 %v222
    %v277 = vunpack.c.l.b16 %v223
    %v278 = vunpack.c.h.b16 %v223
    %v279 = vunpack.c.l.b16 %v224
    %v280 = vunpack.c.h.b16 %v224
    %v281 = vunpack.c.l.b16 %v225
    %v282 = vunpack.c.h.b16 %v225
    %v283 = vunpack.c.l.b16 %v226
    %v284 = vunpack.c.h.b16 %v226
    %v285 = vunpack.c.l.b16 %v227
    %v286 = vunpack.c.h.b16 %v227
    %v287 = vunpack.c.l.b16 %v228
    %v288 = vunpack.c.h.b16 %v228
    %v289 = vpack.c.b16 %v259, %v257
    %v290 = vpack.c.b16 %v260, %v258
    %v291 = vpack.c.b16 %v263, %v261
    %v292 = vpack.c.b16 %v264, %v262
    %v293 = vpack.c.b16 %v267, %v265
    %v294 = vpack.c.b16 %v268, %v266
    %v295 = vpack.c.b16 %v271, %v269
    %v296 = vpack.c.b16 %v272, %v270
    %v297 = vpack.c.b16 %v275, %v273
    %v298 = vpack.c.b16 %v276, %v274
    %v299 = vpack.c.b16 %v279, %v277
    %v300 = vpack.c.b16 %v280, %v278
    %v301 = vpack.c.b16 %v283, %v281
    %v302 = vpack.c.b16 %v284, %v282
    %v303 = vpack.c.b16 %v287, %v285
    %v304 = vpack.c.b16 %v288, %v286
    %321 = vmatprep.subr.bf16.mxu0 %v304
    %322 = vmatpush1.bf16.msra.mxu0 %v303
    %323 = vmatprep.subr.bf16.mxu0 %v302
    %324 = vmatpush1.bf16.msra.mxu0 %v301
    %325 = vmatprep.subr.bf16.mxu0 %v300
    %326 = vmatpush1.bf16.msra.mxu0 %v299
    %327 = vmatprep.subr.bf16.mxu0 %v298
    %328 = vmatpush1.bf16.msra.mxu0 %v297
    %329 = vmatprep.subr.bf16.mxu0 %v296
    %330 = vmatpush1.bf16.msra.mxu0 %v295
    %331 = vmatprep.subr.bf16.mxu0 %v294
    %332 = vmatpush1.bf16.msra.mxu0 %v293
    %333 = vmatprep.subr.bf16.mxu0 %v292
    %334 = vmatpush1.bf16.msra.mxu0 %v291
    %335 = vmatprep.subr.bf16.mxu0 %v290
    %336 = vmatpush1.bf16.msra.mxu0 %v289
    %337 = vmatprep.subr.bf16.mxu0 0
    %338 = vmatpush2.bf16.msra.mxu0 0
    %339 = vmatprep.subr.bf16.mxu0 0
    %340 = vmatpush2.bf16.msra.mxu0 0
    %341 = vmatprep.subr.bf16.mxu0 0
    %342 = vmatpush2.bf16.msra.mxu0 0
    %343 = vmatprep.subr.bf16.mxu0 0
    %344 = vmatpush2.bf16.msra.mxu0 0
    %345 = vmatprep.subr.bf16.mxu0 0
    %346 = vmatpush2.bf16.msra.mxu0 0
    %347 = vmatprep.subr.bf16.mxu0 0
    %348 = vmatpush2.bf16.msra.mxu0 0
    %349 = vmatprep.subr.bf16.mxu0 0
    %350 = vmatpush2.bf16.msra.mxu0 0
    %351 = vmatprep.subr.bf16.mxu0 0
    %352 = vmatpush2.bf16.msra.mxu0 0
    %353 = vmatprep.mubr.bf16.mxu0 0
    %354 = vmatmul.mubr.bf16.gmra.mxu0 %v212
    %v355 = vpop.f32.mrf.mxu0
    %v356 = vadd.f32 %v234, %v355
    %v357 = vpop.f32.mrf.mxu0
    %v358 = vadd.f32 %v238, %v357
    %v359 = vpop.f32.mrf.mxu0
    %v360 = vpop.f32.mrf.mxu0
    %361 = vdwg.mxu0
    %v362 = vxor.u32 %v358, 2147483648
    %v363 = vmul.f32 %v362, 1.442695
    %v364 = vpow.pop %v363
    %v365 = vadd.f32 %v364, 1.0
    %v366 = vrcp.pop %v365
    %v367 = vmul.f32 1.0, %v366
    %v368 = vmul.f32 %v356, %v367
    %v369 = vadd.f32 %v368, %v200
    %v370 = vmax.f32 %v369, 0.0
    %vm371 = vcmask 130048
    %372 = vst.msk [vmem:[#allocation8] sm:$0xff] %vm371, %v370
    // Predicated region
    $region34: #{tpu_custom_call.1} parent=1 // pred_check
      _
    $region35: #{tpu_custom_call.1} parent=1 // pred_check_branch
      %374 = sbr.rel (0) target = $region37
    $region36: #{tpu_custom_call.1} parent=1 // pred_region
      %s376 = ssub.s32 128, 128
      %377 = vsyncadd [#allocation4], %s376
      %s379 = sshll.u32 [#allocation8], 4
      %s380 = int_to_ptr.vmem [resolvable:$true] %s379
      %382 = dma.vmem_to_hbm [thread:$0]  %s380, 128, %s5, [#allocation4]
    $region37: #{tpu_custom_call.1} parent=1 // pred_fallthru
      _
    // Predicated region
    $region38: #{tpu_custom_call.1} parent=1 // pred_check
      _
    $region39: #{tpu_custom_call.1} parent=1 // pred_check_branch
      %384 = sbr.rel (0) target = $region41
    $region40: #{tpu_custom_call.1} parent=1 // pred_region
      %385 = dma.done [#allocation4], 128
    $region41: #{tpu_custom_call.1} parent=1 // pred_fallthru
      _
    %386 = vsyncpa [#allocation3], 1
    %387 = vsyncpa [#allocation6], 1
    %388 = vsyncpa [#allocation4], 1

</llo_original>
